<compile_context>
chip_gen: v6e
topology: v6e:2x2x1
jax: 0.10.0
libtpu: 0.0.40
codegen_flags: <defaults>
</compile_context>

<pallas_src>
import jax
import jax.numpy as jnp
import numpy as np
from jax.experimental import pallas as pl
from jax.experimental.pallas import tpu as pltpu


# ---------------------------------------------------------------------------
# Pallas kernel: fused (folded to_latent) + N residual ReLU blocks + final linear
# ---------------------------------------------------------------------------
def mlp_kernel(x_ref,
               w0_ref, b0_ref,
               wh_ref, bh_ref,     # stacked hidden weights (n_hidden, L, L) / (n_hidden, 1, L)
               wf_ref, bf_ref,
               o_ref):
    # MXU operand dtype follows the stored weight dtype (f32 or bf16);
    # bias add / residual add / ReLU stay in f32 (VPU), accumulation is f32.
    cdt = w0_ref.dtype

    x = x_ref[...]
    if x.dtype != cdt:                      # no-op when activations are streamed in cdt
        x = x.astype(cdt)

    # y = ReLU(to_latent(x))  -- compress conv already folded into w0/b0
    y = jnp.dot(x, w0_ref[...], preferred_element_type=jnp.float32) + b0_ref[...]
    y = jnp.maximum(y, 0.0)

    # residual hidden layers: y = ReLU(fc(y) + y)   (statically unrolled)
    for j in range(wh_ref.shape[0]):
        z = jnp.dot(y.astype(cdt), wh_ref[j],
                    preferred_element_type=jnp.float32) + bh_ref[j]
        y = jnp.maximum(z + y, 0.0)

    # final linear (no activation, no residual)
    o_ref[...] = (jnp.dot(y.astype(cdt), wf_ref[...],
                          preferred_element_type=jnp.float32)
                  + bf_ref[...]).astype(o_ref.dtype)


# ---------------------------------------------------------------------------
# One-time parameter preparation (fold compress conv, transpose, stack, cast)
# ---------------------------------------------------------------------------
def prepare_kernel_params(params, dim_in, num_channels_compress,
                          compute_dtype=jnp.float32, num_hidden_layers=3):
    """Fold Conv2d(1x1)+Flatten into the first Linear and pre-layout all weights.

    Weights are (in_features, out_features) in `compute_dtype`; hidden layers are
    stacked along a leading axis; biases are f32 with a broadcastable row axis.
    """
    C, H, W = dim_in
    w0, b0 = params["w0"], params["b0"]          # (L, Cc*H*W), (L,)
    L = w0.shape[0]

    if num_channels_compress > 0:
        wc, bc = params["compress_w"], params["compress_b"]   # (Cc, C), (Cc,)
        Cc = wc.shape[0]
        w0r = w0.reshape(L, Cc, H * W)
        # z[b,l] = sum_{o,p} w0[l,o,p] * (sum_c wc[o,c] x[b,c,p] + bc[o]) + b0[l]
        #        = sum_{c,p} W0'[l,c,p] x[b,c,p] + b0'[l]
        w0_fold = jnp.einsum("lop,oc->lcp", w0r, wc).reshape(L, C * H * W)
        b0_fold = b0 + jnp.einsum("lop,o->l", w0r, bc)
    else:
        w0_fold, b0_fold = w0, b0

    w_hidden = jnp.stack([params[f"w{i}"].T for i in range(1, num_hidden_layers + 1)])
    b_hidden = jnp.stack([params[f"b{i}"].reshape(1, -1)
                          for i in range(1, num_hidden_layers + 1)])

    return {
        "w0": jnp.asarray(w0_fold.T, dtype=compute_dtype),
        "b0": jnp.asarray(b0_fold.reshape(1, -1), dtype=jnp.float32),
        "wh": jnp.asarray(w_hidden, dtype=compute_dtype),       # (n_hidden, L, L)
        "bh": jnp.asarray(b_hidden, dtype=jnp.float32),         # (n_hidden, 1, L)
        "wf": jnp.asarray(params["wf"].T, dtype=compute_dtype),
        "bf": jnp.asarray(params["bf"].reshape(1, -1), dtype=jnp.float32),
    }


def _round_up(x, m):
    return ((x + m - 1) // m) * m


# ---------------------------------------------------------------------------
# Forward wrapper: single pallas_call, 1-D grid over the batch/row dimension
# ---------------------------------------------------------------------------
def mlp_forward(x, prep, dim_out, *, max_m_block=2048,
                out_dtype=jnp.float32, activation_dtype=None):
    B = x.shape[0]
    # torch.nn.Flatten(start_dim=1) on NCHW == plain reshape (compress folded away)
    x_flat = x.reshape(B, -1)
    if activation_dtype is not None and x_flat.dtype != activation_dtype:
        # Stream activations narrow (e.g. bf16): halves the dominant HBM read.
        # In a real pipeline this cast fuses into the producer of x.
        x_flat = x_flat.astype(activation_dtype)
    K = x_flat.shape[1]
    n_out = prep["wf"].shape[1]

    # Row tile: multiple of 8 sublanes, <= max_m_block rows, and sized so the
    # parallel grid axis has >= 2 steps whenever B allows it (v7x: 2 TCs).
    # 2048 x 1024 f32 x 2 pipeline buffers ~= 16 MiB -- fits every generation.
    m_blk = max(8, min(max_m_block, _round_up(pl.cdiv(B, 2), 8)))
    grid = (pl.cdiv(B, m_blk),)   # partial last block handled by Pallas masking

    vmem = pltpu.MemorySpace.VMEM
    act_spec = pl.BlockSpec((m_blk, K), lambda i: (i, 0), memory_space=vmem)
    out_spec = pl.BlockSpec((m_blk, n_out), lambda i: (i, 0), memory_space=vmem)

    def resident(a):
        # Full-array block + constant index_map -> DMA'd once, stays VMEM-resident
        # across grid steps while activation tiles stream.
        nd = a.ndim
        return pl.BlockSpec(a.shape, lambda i, _nd=nd: (0,) * _nd, memory_space=vmem)

    out_flat = pl.pallas_call(
        mlp_kernel,
        out_shape=jax.ShapeDtypeStruct((B, n_out), out_dtype),
        grid=grid,
        in_specs=[act_spec,
                  resident(prep["w0"]), resident(prep["b0"]),
                  resident(prep["wh"]), resident(prep["bh"]),
                  resident(prep["wf"]), resident(prep["bf"])],
        out_specs=out_spec,
        compiler_params=pltpu.CompilerParams(
            dimension_semantics=("parallel",),         # sharded across TCs on v7x
            vmem_limit_bytes=48 * 1024 * 1024),        # <= 64 MiB physical on v7x
    )(x_flat,
      prep["w0"], prep["b0"],
      prep["wh"], prep["bh"],
      prep["wf"], prep["bf"])

    return out_flat.reshape(B, *dim_out)


# ---------------------------------------------------------------------------
# Deterministic parameter init (torch-like uniform(-1/sqrt(fan_in), +))
# ---------------------------------------------------------------------------
def init_params(key, dim_in, dim_latent, dim_out, num_channels_compress):
    C, H, W = dim_in
    dim_in_flat = num_channels_compress * H * W if num_channels_compress > 0 else C * H * W
    dim_out_flat = int(np.prod(dim_out))

    def linear_init(key, fan_out, fan_in):
        kw, kb = jax.random.split(key)
        bound = 1.0 / np.sqrt(fan_in)
        w = jax.random.uniform(kw, (fan_out, fan_in), jnp.float32, -bound, bound)
        b = jax.random.uniform(kb, (fan_out,), jnp.float32, -bound, bound)
        return w, b

    keys = jax.random.split(key, 6)
    params = {}
    if num_channels_compress > 0:
        params["compress_w"], params["compress_b"] = linear_init(
            keys[0], num_channels_compress, C)
    params["w0"], params["b0"] = linear_init(keys[1], dim_latent, dim_in_flat)
    params["w1"], params["b1"] = linear_init(keys[2], dim_latent, dim_latent)
    params["w2"], params["b2"] = linear_init(keys[3], dim_latent, dim_latent)
    params["w3"], params["b3"] = linear_init(keys[4], dim_latent, dim_latent)
    params["wf"], params["bf"] = linear_init(keys[5], dim_out_flat, dim_latent)
    return params


# ---------------------------------------------------------------------------
# Pure-JAX reference (same math as the PyTorch module, un-folded) for verification
# ---------------------------------------------------------------------------
def mlp_reference(x, params, dim_out, num_channels_compress):
    B = x.shape[0]
    if num_channels_compress > 0:
        wc, bc = params["compress_w"], params["compress_b"]
        y = jnp.einsum("bchw,oc->bohw", x, wc) + bc[None, :, None, None]
    else:
        y = x
    y = y.reshape(B, -1)
    y = jax.nn.relu(y @ params["w0"].T + params["b0"])
    for i in (1, 2, 3):
        y = jax.nn.relu(y @ params[f"w{i}"].T + params[f"b{i}"] + y)
    y = y @ params["wf"].T + params["bf"]
    return y.reshape(B, *dim_out)


# ---------------------------------------------------------------------------
if __name__ == "__main__":
    # module config  (NOTE: dim_latent=32 under-fills lanes/MXU; if the real
    # config scales, pick a multiple of 128 -- currently hidden behind DMA.)
    dim_in = (4, 16, 16)          # (C, H, W)
    dim_latent = 32
    dim_out = (2, 8, 8)           # prod = 128 -> lane-dense output stores
    num_channels_compress = 2     # exercises the Conv2d(..., 1) compress path
    B = 2                         # exercises the partial (masked) last row-block

    key = jax.random.PRNGKey(0)
    kx, kp = jax.random.split(key)
    x = jax.random.normal(kx, (B, *dim_in), dtype=jnp.float32)
    params = init_params(kp, dim_in, dim_latent, dim_out, num_channels_compress)
    ref = jax.block_until_ready(
        mlp_reference(x, params, dim_out, num_channels_compress))

    # f32 path (exact-math check of the conv fold + fused kernel + block masking)
    prep_f32 = prepare_kernel_params(params, dim_in, num_channels_compress,
                                     compute_dtype=jnp.float32)
    out_f32 = jax.block_until_ready(mlp_forward(x, prep_f32, dim_out))
    assert out_f32.shape == (B, *dim_out), out_f32.shape
    np.testing.assert_allclose(np.asarray(out_f32), np.asarray(ref),
                               rtol=1e-4, atol=1e-5)

    # bf16 fast path: bf16 weights, bf16-streamed activations, bf16 writeback,
    # f32 accumulation and f32 elementwise (bias/residual/ReLU) throughout.
    prep_bf16 = prepare_kernel_params(params, dim_in, num_channels_compress,
                                      compute_dtype=jnp.bfloat16)
    out_bf16 = jax.block_until_ready(
        mlp_forward(x, prep_bf16, dim_out,
                    out_dtype=jnp.bfloat16, activation_dtype=jnp.bfloat16))
    np.testing.assert_allclose(np.asarray(out_bf16).astype(np.float32),
                               np.asarray(ref), rtol=5e-2, atol=5e-2)

    print("KERNEL_OK")
</pallas_src>

<mosaic_0001>
module attributes {stable_mosaic.version = 11 : i64} {
  func.func @mlp_kernel(%arg0: i32, %arg1: memref<8x1024xf32, #tpu.memory_space<vmem>>, %arg2: memref<1024x32xf32, #tpu.memory_space<vmem>>, %arg3: memref<1x32xf32, #tpu.memory_space<vmem>>, %arg4: memref<3x32x32xf32, #tpu.memory_space<vmem>>, %arg5: memref<3x1x32xf32, #tpu.memory_space<vmem>>, %arg6: memref<32x128xf32, #tpu.memory_space<vmem>>, %arg7: memref<1x128xf32, #tpu.memory_space<vmem>>, %arg8: memref<8x128xf32, #tpu.memory_space<vmem>>) attributes {dimension_semantics = [#tpu.dimension_semantics<parallel>], iteration_bounds = array<i64: 1>, scalar_prefetch = 0 : i64, scratch_operands = 0 : i64, tpu.core_type = #tpu.core_type<tc>, window_params = [{transform_indices = @transform_0, window_bounds = array<i64: 8, 1024>}, {pipeline_mode = #tpu.pipeline_mode<synchronous>, transform_indices = @transform_1, window_bounds = array<i64: 1024, 32>}, {pipeline_mode = #tpu.pipeline_mode<synchronous>, transform_indices = @transform_2, window_bounds = array<i64: 1, 32>}, {pipeline_mode = #tpu.pipeline_mode<synchronous>, transform_indices = @transform_3, window_bounds = array<i64: 3, 32, 32>}, {pipeline_mode = #tpu.pipeline_mode<synchronous>, transform_indices = @transform_4, window_bounds = array<i64: 3, 1, 32>}, {pipeline_mode = #tpu.pipeline_mode<synchronous>, transform_indices = @transform_5, window_bounds = array<i64: 32, 128>}, {pipeline_mode = #tpu.pipeline_mode<synchronous>, transform_indices = @transform_6, window_bounds = array<i64: 1, 128>}, {transform_indices = @transform_7, window_bounds = array<i64: 8, 128>}]} {
    %c0 = arith.constant 0 : index
    %c0_0 = arith.constant 0 : index
    %0 = vector.load %arg1[%c0, %c0_0] : memref<8x1024xf32, #tpu.memory_space<vmem>>, vector<8x1024xf32>
    %c0_1 = arith.constant 0 : index
    %c0_2 = arith.constant 0 : index
    %1 = vector.load %arg2[%c0_1, %c0_2] : memref<1024x32xf32, #tpu.memory_space<vmem>>, vector<1024x32xf32>
    %cst = arith.constant dense<0.000000e+00> : vector<8x32xf32>
    %2 = tpu.matmul %0, %1, %cst {dimension_numbers = #tpu.dot_dimension_numbers<[1], [0], [0], [1], [0, 0, 1, 1], [], []>} : vector<8x1024xf32>, vector<1024x32xf32>, vector<8x32xf32> -> vector<8x32xf32>
    %c0_3 = arith.constant 0 : index
    %c0_4 = arith.constant 0 : index
    %3 = vector.load %arg3[%c0_3, %c0_4] : memref<1x32xf32, #tpu.memory_space<vmem>>, vector<1x32xf32>
    %4 = vector.broadcast %3 : vector<1x32xf32> to vector<8x32xf32>
    %5 = arith.addf %2, %4 : vector<8x32xf32>
    %cst_5 = arith.constant 0.000000e+00 : f32
    %6 = vector.broadcast %cst_5 : f32 to vector<8x32xf32>
    %7 = arith.maximumf %5, %6 : vector<8x32xf32>
    %c0_6 = arith.constant 0 : index
    %c0_7 = arith.constant 0 : index
    %c0_8 = arith.constant 0 : index
    %8 = vector.load %arg4[%c0_6, %c0_7, %c0_8] : memref<3x32x32xf32, #tpu.memory_space<vmem>>, vector<1x32x32xf32>
    %9 = vector.shape_cast %8 : vector<1x32x32xf32> to vector<32x32xf32>
    %cst_9 = arith.constant dense<0.000000e+00> : vector<8x32xf32>
    %10 = tpu.matmul %7, %9, %cst_9 {dimension_numbers = #tpu.dot_dimension_numbers<[1], [0], [0], [1], [0, 0, 1, 1], [], []>} : vector<8x32xf32>, vector<32x32xf32>, vector<8x32xf32> -> vector<8x32xf32>
    %c0_10 = arith.constant 0 : index
    %c0_11 = arith.constant 0 : index
    %c0_12 = arith.constant 0 : index
    %11 = vector.load %arg5[%c0_10, %c0_11, %c0_12] : memref<3x1x32xf32, #tpu.memory_space<vmem>>, vector<1x1x32xf32>
    %12 = vector.shape_cast %11 : vector<1x1x32xf32> to vector<1x32xf32>
    %13 = vector.broadcast %12 : vector<1x32xf32> to vector<8x32xf32>
    %14 = arith.addf %10, %13 : vector<8x32xf32>
    %15 = arith.addf %14, %7 : vector<8x32xf32>
    %cst_13 = arith.constant 0.000000e+00 : f32
    %16 = vector.broadcast %cst_13 : f32 to vector<8x32xf32>
    %17 = arith.maximumf %15, %16 : vector<8x32xf32>
    %c1 = arith.constant 1 : index
    %c0_14 = arith.constant 0 : index
    %c0_15 = arith.constant 0 : index
    %18 = vector.load %arg4[%c1, %c0_14, %c0_15] : memref<3x32x32xf32, #tpu.memory_space<vmem>>, vector<1x32x32xf32>
    %19 = vector.shape_cast %18 : vector<1x32x32xf32> to vector<32x32xf32>
    %cst_16 = arith.constant dense<0.000000e+00> : vector<8x32xf32>
    %20 = tpu.matmul %17, %19, %cst_16 {dimension_numbers = #tpu.dot_dimension_numbers<[1], [0], [0], [1], [0, 0, 1, 1], [], []>} : vector<8x32xf32>, vector<32x32xf32>, vector<8x32xf32> -> vector<8x32xf32>
    %c1_17 = arith.constant 1 : index
    %c0_18 = arith.constant 0 : index
    %c0_19 = arith.constant 0 : index
    %21 = vector.load %arg5[%c1_17, %c0_18, %c0_19] : memref<3x1x32xf32, #tpu.memory_space<vmem>>, vector<1x1x32xf32>
    %22 = vector.shape_cast %21 : vector<1x1x32xf32> to vector<1x32xf32>
    %23 = vector.broadcast %22 : vector<1x32xf32> to vector<8x32xf32>
    %24 = arith.addf %20, %23 : vector<8x32xf32>
    %25 = arith.addf %24, %17 : vector<8x32xf32>
    %cst_20 = arith.constant 0.000000e+00 : f32
    %26 = vector.broadcast %cst_20 : f32 to vector<8x32xf32>
    %27 = arith.maximumf %25, %26 : vector<8x32xf32>
    %c2 = arith.constant 2 : index
    %c0_21 = arith.constant 0 : index
    %c0_22 = arith.constant 0 : index
    %28 = vector.load %arg4[%c2, %c0_21, %c0_22] : memref<3x32x32xf32, #tpu.memory_space<vmem>>, vector<1x32x32xf32>
    %29 = vector.shape_cast %28 : vector<1x32x32xf32> to vector<32x32xf32>
    %cst_23 = arith.constant dense<0.000000e+00> : vector<8x32xf32>
    %30 = tpu.matmul %27, %29, %cst_23 {dimension_numbers = #tpu.dot_dimension_numbers<[1], [0], [0], [1], [0, 0, 1, 1], [], []>} : vector<8x32xf32>, vector<32x32xf32>, vector<8x32xf32> -> vector<8x32xf32>
    %c2_24 = arith.constant 2 : index
    %c0_25 = arith.constant 0 : index
    %c0_26 = arith.constant 0 : index
    %31 = vector.load %arg5[%c2_24, %c0_25, %c0_26] : memref<3x1x32xf32, #tpu.memory_space<vmem>>, vector<1x1x32xf32>
    %32 = vector.shape_cast %31 : vector<1x1x32xf32> to vector<1x32xf32>
    %33 = vector.broadcast %32 : vector<1x32xf32> to vector<8x32xf32>
    %34 = arith.addf %30, %33 : vector<8x32xf32>
    %35 = arith.addf %34, %27 : vector<8x32xf32>
    %cst_27 = arith.constant 0.000000e+00 : f32
    %36 = vector.broadcast %cst_27 : f32 to vector<8x32xf32>
    %37 = arith.maximumf %35, %36 : vector<8x32xf32>
    %c0_28 = arith.constant 0 : index
    %c0_29 = arith.constant 0 : index
    %38 = vector.load %arg6[%c0_28, %c0_29] : memref<32x128xf32, #tpu.memory_space<vmem>>, vector<32x128xf32>
    %cst_30 = arith.constant dense<0.000000e+00> : vector<8x128xf32>
    %39 = tpu.matmul %37, %38, %cst_30 {dimension_numbers = #tpu.dot_dimension_numbers<[1], [0], [0], [1], [0, 0, 1, 1], [], []>} : vector<8x32xf32>, vector<32x128xf32>, vector<8x128xf32> -> vector<8x128xf32>
    %c0_31 = arith.constant 0 : index
    %c0_32 = arith.constant 0 : index
    %40 = vector.load %arg7[%c0_31, %c0_32] : memref<1x128xf32, #tpu.memory_space<vmem>>, vector<1x128xf32>
    %41 = vector.broadcast %40 : vector<1x128xf32> to vector<8x128xf32>
    %42 = arith.addf %39, %41 : vector<8x128xf32>
    %c0_33 = arith.constant 0 : index
    %c0_34 = arith.constant 0 : index
    %43 = vector.load %arg8[%c0_33, %c0_34] : memref<8x128xf32, #tpu.memory_space<vmem>>, vector<8x128xf32>
    tpu.vector_store %arg8[%c0_33, %c0_34], %42 {strides = array<i32>} : memref<8x128xf32, #tpu.memory_space<vmem>>, vector<8x128xf32>,
    return
  }
  func.func @transform_0(%arg0: i32) -> (i32, i32) {
    %c0_i32 = arith.constant 0 : i32
    %c0_i32_0 = arith.constant 0 : i32
    return %arg0, %c0_i32 : i32, i32
  }
  func.func @transform_1(%arg0: i32) -> (i32, i32) {
    %c0_i32 = arith.constant 0 : i32
    %c0_i32_0 = arith.constant 0 : i32
    %c0_i32_1 = arith.constant 0 : i32
    return %c0_i32, %c0_i32_0 : i32, i32
  }
  func.func @transform_2(%arg0: i32) -> (i32, i32) {
    %c0_i32 = arith.constant 0 : i32
    %c0_i32_0 = arith.constant 0 : i32
    %c0_i32_1 = arith.constant 0 : i32
    return %c0_i32, %c0_i32_0 : i32, i32
  }
  func.func @transform_3(%arg0: i32) -> (i32, i32, i32) {
    %c0_i32 = arith.constant 0 : i32
    %c0_i32_0 = arith.constant 0 : i32
    %c0_i32_1 = arith.constant 0 : i32
    %c0_i32_2 = arith.constant 0 : i32
    return %c0_i32, %c0_i32_0, %c0_i32_1 : i32, i32, i32
  }
  func.func @transform_4(%arg0: i32) -> (i32, i32, i32) {
    %c0_i32 = arith.constant 0 : i32
    %c0_i32_0 = arith.constant 0 : i32
    %c0_i32_1 = arith.constant 0 : i32
    %c0_i32_2 = arith.constant 0 : i32
    return %c0_i32, %c0_i32_0, %c0_i32_1 : i32, i32, i32
  }
  func.func @transform_5(%arg0: i32) -> (i32, i32) {
    %c0_i32 = arith.constant 0 : i32
    %c0_i32_0 = arith.constant 0 : i32
    %c0_i32_1 = arith.constant 0 : i32
    return %c0_i32, %c0_i32_0 : i32, i32
  }
  func.func @transform_6(%arg0: i32) -> (i32, i32) {
    %c0_i32 = arith.constant 0 : i32
    %c0_i32_0 = arith.constant 0 : i32
    %c0_i32_1 = arith.constant 0 : i32
    return %c0_i32, %c0_i32_0 : i32, i32
  }
  func.func @transform_7(%arg0: i32) -> (i32, i32) {
    %c0_i32 = arith.constant 0 : i32
    %c0_i32_0 = arith.constant 0 : i32
    return %arg0, %c0_i32 : i32, i32
  }
}

</mosaic_0001>

<llo_original>
// kernel: tpu_custom_call.1
$region0: #{tpu_custom_call.1}
  #allocation0 [shape = 'u32[]', space=smem, size = 0x4, offset = 0x4, fixed_abs, tag = 'smem constant byte address 0x4 - core index']
  #allocation1 [shape = 'u32[144,128]{1,0:T(1,128)}', space=vmem, size = 0x12000, scoped, tag = 'internal scratch']
  %s0 = inlined_call_operand.vmem [shape: f32[2,1024], index: 0, kind: input, shape index: {}]
  %s1 = inlined_call_operand.vmem [shape: f32[1024,32], index: 1, kind: input, shape index: {}]
  %s2 = inlined_call_operand.vmem [shape: f32[1,32], index: 2, kind: input, shape index: {}]
  %s3 = inlined_call_operand.vmem [shape: f32[3,32,32], index: 3, kind: input, shape index: {}]
  %s4 = inlined_call_operand.vmem [shape: f32[3,1,32], index: 4, kind: input, shape index: {}]
  %s5 = inlined_call_operand.vmem [shape: f32[32,128], index: 5, kind: input, shape index: {}]
  %s6 = inlined_call_operand.vmem [shape: f32[1,128], index: 6, kind: input, shape index: {}]
  %s7 = inlined_call_operand.hbm [shape: f32[2,128], index: 7, kind: output, shape index: {}]
  %s8 = sld [smem:[#allocation0]]
  $region38: #{tpu_custom_call.1} parent=0
    _
  %s10 = ssub.s32 1, %s8
  %s11 = scalar_select 0, %s10, %s8
  $region1: #{tpu_custom_call.1} parent=0
    #allocation2 [shape = 'u8[4096]{0}', space=vmem, size = 0x1000, scoped, tag = 'output window, operand 0, single buffered']
    #allocation3 [shape = 's32[1]{0}', space=sflag, size = 0x4, scoped, tag = 'scoped memory for tpu_custom_call.1']
    %12 = vsyncpa [#allocation3], 0
    // Predicated region
    $region2: #{tpu_custom_call.1} parent=1 // pred_check
      _
    $region3: #{tpu_custom_call.1} parent=1 // pred_check_branch
      %14 = sbr.rel (0) target = $region5
    $region4: #{tpu_custom_call.1} parent=1 // pred_region
      _
    $region5: #{tpu_custom_call.1} parent=1 // pred_fallthru
      _
    // Predicated region
    $region6: #{tpu_custom_call.1} parent=1 // pred_check
      _
    $region7: #{tpu_custom_call.1} parent=1 // pred_check_branch
      %16 = sbr.rel (0) target = $region9
    $region8: #{tpu_custom_call.1} parent=1 // pred_region
      _
    $region9: #{tpu_custom_call.1} parent=1 // pred_fallthru
      _
    // Predicated region
    $region10: #{tpu_custom_call.1} parent=1 // pred_check
      _
    $region11: #{tpu_custom_call.1} parent=1 // pred_check_branch
      %18 = sbr.rel (0) target = $region13
    $region12: #{tpu_custom_call.1} parent=1 // pred_region
      _
    $region13: #{tpu_custom_call.1} parent=1 // pred_fallthru
      _
    // Predicated region
    $region14: #{tpu_custom_call.1} parent=1 // pred_check
      _
    $region15: #{tpu_custom_call.1} parent=1 // pred_check_branch
      %20 = sbr.rel (0) target = $region17
    $region16: #{tpu_custom_call.1} parent=1 // pred_region
      _
    $region17: #{tpu_custom_call.1} parent=1 // pred_fallthru
      _
    // Predicated region
    $region18: #{tpu_custom_call.1} parent=1 // pred_check
      _
    $region19: #{tpu_custom_call.1} parent=1 // pred_check_branch
      %22 = sbr.rel (0) target = $region21
    $region20: #{tpu_custom_call.1} parent=1 // pred_region
      _
    $region21: #{tpu_custom_call.1} parent=1 // pred_fallthru
      _
    // Predicated region
    $region22: #{tpu_custom_call.1} parent=1 // pred_check
      _
    $region23: #{tpu_custom_call.1} parent=1 // pred_check_branch
      %24 = sbr.rel (0) target = $region25
    $region24: #{tpu_custom_call.1} parent=1 // pred_region
      _
    $region25: #{tpu_custom_call.1} parent=1 // pred_fallthru
      _
    // Predicated region
    $region26: #{tpu_custom_call.1} parent=1 // pred_check
      _
    $region27: #{tpu_custom_call.1} parent=1 // pred_check_branch
      %26 = sbr.rel (0) target = $region29
    $region28: #{tpu_custom_call.1} parent=1 // pred_region
      _
    $region29: #{tpu_custom_call.1} parent=1 // pred_fallthru
      _
    %v27 = vld [vmem:[%s0] sm:$0xff]
    %v28 = vld [vmem:[%s0 + $0x8] sm:$0xff]
    %v29 = vld [vmem:[%s0 + $0x10] sm:$0xff]
    %v30 = vld [vmem:[%s0 + $0x18] sm:$0xff]
    %v31 = vld [vmem:[%s0 + $0x20] sm:$0xff]
    %v32 = vld [vmem:[%s0 + $0x28] sm:$0xff]
    %v33 = vld [vmem:[%s0 + $0x30] sm:$0xff]
    %v34 = vld [vmem:[%s0 + $0x38] sm:$0xff]
    %v35 = vld [vmem:[%s1] sm:$0xff]
    %v36 = vld [vmem:[%s1 + $0x8] sm:$0xff]
    %v37 = vld [vmem:[%s1 + $0x10] sm:$0xff]
    %v38 = vld [vmem:[%s1 + $0x18] sm:$0xff]
    %v39 = vld [vmem:[%s1 + $0x20] sm:$0xff]
    %v40 = vld [vmem:[%s1 + $0x28] sm:$0xff]
    %v41 = vld [vmem:[%s1 + $0x30] sm:$0xff]
    %v42 = vld [vmem:[%s1 + $0x38] sm:$0xff]
    %v43 = vld [vmem:[%s1 + $0x40] sm:$0xff]
    %v44 = vld [vmem:[%s1 + $0x48] sm:$0xff]
    %v45 = vld [vmem:[%s1 + $0x50] sm:$0xff]
    %v46 = vld [vmem:[%s1 + $0x58] sm:$0xff]
    %v47 = vld [vmem:[%s1 + $0x60] sm:$0xff]
    %v48 = vld [vmem:[%s1 + $0x68] sm:$0xff]
    %v49 = vld [vmem:[%s1 + $0x70] sm:$0xff]
    %v50 = vld [vmem:[%s1 + $0x78] sm:$0xff]
    %v51 = vld [vmem:[%s1 + $0x80] sm:$0xff]
    %v52 = vld [vmem:[%s1 + $0x88] sm:$0xff]
    %v53 = vld [vmem:[%s1 + $0x90] sm:$0xff]
    %v54 = vld [vmem:[%s1 + $0x98] sm:$0xff]
    %v55 = vld [vmem:[%s1 + $0xa0] sm:$0xff]
    %v56 = vld [vmem:[%s1 + $0xa8] sm:$0xff]
    %v57 = vld [vmem:[%s1 + $0xb0] sm:$0xff]
    %v58 = vld [vmem:[%s1 + $0xb8] sm:$0xff]
    %v59 = vld [vmem:[%s1 + $0xc0] sm:$0xff]
    %v60 = vld [vmem:[%s1 + $0xc8] sm:$0xff]
    %v61 = vld [vmem:[%s1 + $0xd0] sm:$0xff]
    %v62 = vld [vmem:[%s1 + $0xd8] sm:$0xff]
    %v63 = vld [vmem:[%s1 + $0xe0] sm:$0xff]
    %v64 = vld [vmem:[%s1 + $0xe8] sm:$0xff]
    %v65 = vld [vmem:[%s1 + $0xf0] sm:$0xff]
    %v66 = vld [vmem:[%s1 + $0xf8] sm:$0xff]
    %v67 = vld [vmem:[%s1 + $0x100] sm:$0xff]
    %v68 = vld [vmem:[%s1 + $0x108] sm:$0xff]
    %v69 = vld [vmem:[%s1 + $0x110] sm:$0xff]
    %v70 = vld [vmem:[%s1 + $0x118] sm:$0xff]
    %v71 = vld [vmem:[%s1 + $0x120] sm:$0xff]
    %v72 = vld [vmem:[%s1 + $0x128] sm:$0xff]
    %v73 = vld [vmem:[%s1 + $0x130] sm:$0xff]
    %v74 = vld [vmem:[%s1 + $0x138] sm:$0xff]
    %v75 = vld [vmem:[%s1 + $0x140] sm:$0xff]
    %v76 = vld [vmem:[%s1 + $0x148] sm:$0xff]
    %v77 = vld [vmem:[%s1 + $0x150] sm:$0xff]
    %v78 = vld [vmem:[%s1 + $0x158] sm:$0xff]
    %v79 = vld [vmem:[%s1 + $0x160] sm:$0xff]
    %v80 = vld [vmem:[%s1 + $0x168] sm:$0xff]
    %v81 = vld [vmem:[%s1 + $0x170] sm:$0xff]
    %v82 = vld [vmem:[%s1 + $0x178] sm:$0xff]
    %v83 = vld [vmem:[%s1 + $0x180] sm:$0xff]
    %v84 = vld [vmem:[%s1 + $0x188] sm:$0xff]
    %v85 = vld [vmem:[%s1 + $0x190] sm:$0xff]
    %v86 = vld [vmem:[%s1 + $0x198] sm:$0xff]
    %v87 = vld [vmem:[%s1 + $0x1a0] sm:$0xff]
    %v88 = vld [vmem:[%s1 + $0x1a8] sm:$0xff]
    %v89 = vld [vmem:[%s1 + $0x1b0] sm:$0xff]
    %v90 = vld [vmem:[%s1 + $0x1b8] sm:$0xff]
    %v91 = vld [vmem:[%s1 + $0x1c0] sm:$0xff]
    %v92 = vld [vmem:[%s1 + $0x1c8] sm:$0xff]
    %v93 = vld [vmem:[%s1 + $0x1d0] sm:$0xff]
    %v94 = vld [vmem:[%s1 + $0x1d8] sm:$0xff]
    %v95 = vld [vmem:[%s1 + $0x1e0] sm:$0xff]
    %v96 = vld [vmem:[%s1 + $0x1e8] sm:$0xff]
    %v97 = vld [vmem:[%s1 + $0x1f0] sm:$0xff]
    %v98 = vld [vmem:[%s1 + $0x1f8] sm:$0xff]
    %v99 = vld [vmem:[%s1 + $0x200] sm:$0xff]
    %v100 = vld [vmem:[%s1 + $0x208] sm:$0xff]
    %v101 = vld [vmem:[%s1 + $0x210] sm:$0xff]
    %v102 = vld [vmem:[%s1 + $0x218] sm:$0xff]
    %v103 = vld [vmem:[%s1 + $0x220] sm:$0xff]
    %v104 = vld [vmem:[%s1 + $0x228] sm:$0xff]
    %v105 = vld [vmem:[%s1 + $0x230] sm:$0xff]
    %v106 = vld [vmem:[%s1 + $0x238] sm:$0xff]
    %v107 = vld [vmem:[%s1 + $0x240] sm:$0xff]
    %v108 = vld [vmem:[%s1 + $0x248] sm:$0xff]
    %v109 = vld [vmem:[%s1 + $0x250] sm:$0xff]
    %v110 = vld [vmem:[%s1 + $0x258] sm:$0xff]
    %v111 = vld [vmem:[%s1 + $0x260] sm:$0xff]
    %v112 = vld [vmem:[%s1 + $0x268] sm:$0xff]
    %v113 = vld [vmem:[%s1 + $0x270] sm:$0xff]
    %v114 = vld [vmem:[%s1 + $0x278] sm:$0xff]
    %v115 = vld [vmem:[%s1 + $0x280] sm:$0xff]
    %v116 = vld [vmem:[%s1 + $0x288] sm:$0xff]
    %v117 = vld [vmem:[%s1 + $0x290] sm:$0xff]
    %v118 = vld [vmem:[%s1 + $0x298] sm:$0xff]
    %v119 = vld [vmem:[%s1 + $0x2a0] sm:$0xff]
    %v120 = vld [vmem:[%s1 + $0x2a8] sm:$0xff]
    %v121 = vld [vmem:[%s1 + $0x2b0] sm:$0xff]
    %v122 = vld [vmem:[%s1 + $0x2b8] sm:$0xff]
    %v123 = vld [vmem:[%s1 + $0x2c0] sm:$0xff]
    %v124 = vld [vmem:[%s1 + $0x2c8] sm:$0xff]
    %v125 = vld [vmem:[%s1 + $0x2d0] sm:$0xff]
    %v126 = vld [vmem:[%s1 + $0x2d8] sm:$0xff]
    %v127 = vld [vmem:[%s1 + $0x2e0] sm:$0xff]
    %v128 = vld [vmem:[%s1 + $0x2e8] sm:$0xff]
    %v129 = vld [vmem:[%s1 + $0x2f0] sm:$0xff]
    %v130 = vld [vmem:[%s1 + $0x2f8] sm:$0xff]
    %v131 = vld [vmem:[%s1 + $0x300] sm:$0xff]
    %v132 = vld [vmem:[%s1 + $0x308] sm:$0xff]
    %v133 = vld [vmem:[%s1 + $0x310] sm:$0xff]
    %v134 = vld [vmem:[%s1 + $0x318] sm:$0xff]
    %v135 = vld [vmem:[%s1 + $0x320] sm:$0xff]
    %v136 = vld [vmem:[%s1 + $0x328] sm:$0xff]
    %v137 = vld [vmem:[%s1 + $0x330] sm:$0xff]
    %v138 = vld [vmem:[%s1 + $0x338] sm:$0xff]
    %v139 = vld [vmem:[%s1 + $0x340] sm:$0xff]
    %v140 = vld [vmem:[%s1 + $0x348] sm:$0xff]
    %v141 = vld [vmem:[%s1 + $0x350] sm:$0xff]
    %v142 = vld [vmem:[%s1 + $0x358] sm:$0xff]
    %v143 = vld [vmem:[%s1 + $0x360] sm:$0xff]
    %v144 = vld [vmem:[%s1 + $0x368] sm:$0xff]
    %v145 = vld [vmem:[%s1 + $0x370] sm:$0xff]
    %v146 = vld [vmem:[%s1 + $0x378] sm:$0xff]
    %v147 = vld [vmem:[%s1 + $0x380] sm:$0xff]
    %v148 = vld [vmem:[%s1 + $0x388] sm:$0xff]
    %v149 = vld [vmem:[%s1 + $0x390] sm:$0xff]
    %v150 = vld [vmem:[%s1 + $0x398] sm:$0xff]
    %v151 = vld [vmem:[%s1 + $0x3a0] sm:$0xff]
    %v152 = vld [vmem:[%s1 + $0x3a8] sm:$0xff]
    %v153 = vld [vmem:[%s1 + $0x3b0] sm:$0xff]
    %v154 = vld [vmem:[%s1 + $0x3b8] sm:$0xff]
    %v155 = vld [vmem:[%s1 + $0x3c0] sm:$0xff]
    %v156 = vld [vmem:[%s1 + $0x3c8] sm:$0xff]
    %v157 = vld [vmem:[%s1 + $0x3d0] sm:$0xff]
    %v158 = vld [vmem:[%s1 + $0x3d8] sm:$0xff]
    %v159 = vld [vmem:[%s1 + $0x3e0] sm:$0xff]
    %v160 = vld [vmem:[%s1 + $0x3e8] sm:$0xff]
    %v161 = vld [vmem:[%s1 + $0x3f0] sm:$0xff]
    %v162 = vld [vmem:[%s1 + $0x3f8] sm:$0xff]
    %v163 = vld [vmem:[%s2] sm:$0x1]
    %v165 = vlaneseq
    %v166 = vshrl.u32 %v165, 7
    %v167 = vsub.s32 0, %v166
    %v168 = vrot.slane %v163, %v167
    %v178 = vcombine.low %v27, %v29
    %v179 = vcombine.high %v27, %v29
    %v180 = vcombine.low %v31, %v33
    %v181 = vcombine.high %v31, %v33
    %v183 = vunpack.c.l.s4 1983009808
    %v184 = vunpack.c.0.s8 %v183
    %v185 = vlaneseq
    %v186 = vshrl.u32 %v185, 7
    %v187 = vsub.s32 %v184, %v186
    %v188 = vrot.slane %v178, %v187
    %v190 = vunpack.c.l.s4 1983009808
    %v191 = vunpack.c.0.s8 %v190
    %v192 = vlaneseq
    %v193 = vshrl.u32 %v192, 7
    %v194 = vsub.s32 %v191, %v193
    %v195 = vrot.slane %v179, %v194
    %v197 = vunpack.c.l.s4 1983009808
    %v198 = vunpack.c.0.s8 %v197
    %v199 = vlaneseq
    %v200 = vshrl.u32 %v199, 7
    %v201 = vsub.s32 %v198, %v200
    %v202 = vrot.slane %v180, %v201
    %v204 = vunpack.c.l.s4 1983009808
    %v205 = vunpack.c.0.s8 %v204
    %v206 = vlaneseq
    %v207 = vshrl.u32 %v206, 7
    %v208 = vsub.s32 %v205, %v207
    %v209 = vrot.slane %v181, %v208
    %v210 = vcombine.low %v188, %v202
    %v211 = vcombine.high %v188, %v202
    %v212 = vcombine.low %v195, %v209
    %v213 = vcombine.high %v195, %v209
    %v214 = vcombine.low %v28, %v30
    %v215 = vcombine.high %v28, %v30
    %v216 = vcombine.low %v32, %v34
    %v217 = vcombine.high %v32, %v34
    %v219 = vunpack.c.l.s4 1983009808
    %v220 = vunpack.c.0.s8 %v219
    %v221 = vlaneseq
    %v222 = vshrl.u32 %v221, 7
    %v223 = vsub.s32 %v220, %v222
    %v224 = vrot.slane %v214, %v223
    %v226 = vunpack.c.l.s4 1983009808
    %v227 = vunpack.c.0.s8 %v226
    %v228 = vlaneseq
    %v229 = vshrl.u32 %v228, 7
    %v230 = vsub.s32 %v227, %v229
    %v231 = vrot.slane %v215, %v230
    %v233 = vunpack.c.l.s4 1983009808
    %v234 = vunpack.c.0.s8 %v233
    %v235 = vlaneseq
    %v236 = vshrl.u32 %v235, 7
    %v237 = vsub.s32 %v234, %v236
    %v238 = vrot.slane %v216, %v237
    %v240 = vunpack.c.l.s4 1983009808
    %v241 = vunpack.c.0.s8 %v240
    %v242 = vlaneseq
    %v243 = vshrl.u32 %v242, 7
    %v244 = vsub.s32 %v241, %v243
    %v245 = vrot.slane %v217, %v244
    %v246 = vcombine.low %v224, %v238
    %v247 = vcombine.high %v224, %v238
    %v248 = vcombine.low %v231, %v245
    %v249 = vcombine.high %v231, %v245
    %258 = vmatprep.subr.mxu0 0.0
    %259 = vmatpush1.msra.mxu0 %v50
    %260 = vmatprep.subr.mxu0 0.0
    %261 = vmatpush1.msra.mxu0 %v49
    %262 = vmatprep.subr.mxu0 0.0
    %263 = vmatpush1.msra.mxu0 %v48
    %264 = vmatprep.subr.mxu0 0.0
    %265 = vmatpush1.msra.mxu0 %v47
    %266 = vmatprep.subr.mxu0 0.0
    %267 = vmatpush1.msra.mxu0 %v46
    %268 = vmatprep.subr.mxu0 0.0
    %269 = vmatpush1.msra.mxu0 %v45
    %270 = vmatprep.subr.mxu0 0.0
    %271 = vmatpush1.msra.mxu0 %v44
    %272 = vmatprep.subr.mxu0 0.0
    %273 = vmatpush1.msra.mxu0 %v43
    %274 = vmatprep.subr.mxu0 0.0
    %275 = vmatpush1.msra.mxu0 %v42
    %276 = vmatprep.subr.mxu0 0.0
    %277 = vmatpush1.msra.mxu0 %v41
    %278 = vmatprep.subr.mxu0 0.0
    %279 = vmatpush1.msra.mxu0 %v40
    %280 = vmatprep.subr.mxu0 0.0
    %281 = vmatpush1.msra.mxu0 %v39
    %282 = vmatprep.subr.mxu0 0.0
    %283 = vmatpush1.msra.mxu0 %v38
    %284 = vmatprep.subr.mxu0 0.0
    %285 = vmatpush1.msra.mxu0 %v37
    %286 = vmatprep.subr.mxu0 0.0
    %287 = vmatpush1.msra.mxu0 %v36
    %288 = vmatprep.subr.mxu0 0.0
    %289 = vmatpush1.msra.mxu0 %v35
    %290 = vmatprep.subr.mxu0 0.0
    %291 = vmatpush2.msra.mxu0 %v66
    %292 = vmatprep.subr.mxu0 0.0
    %293 = vmatpush2.msra.mxu0 %v65
    %294 = vmatprep.subr.mxu0 0.0
    %295 = vmatpush2.msra.mxu0 %v64
    %296 = vmatprep.subr.mxu0 0.0
    %297 = vmatpush2.msra.mxu0 %v63
    %298 = vmatprep.subr.mxu0 0.0
    %299 = vmatpush2.msra.mxu0 %v62
    %300 = vmatprep.subr.mxu0 0.0
    %301 = vmatpush2.msra.mxu0 %v61
    %302 = vmatprep.subr.mxu0 0.0
    %303 = vmatpush2.msra.mxu0 %v60
    %304 = vmatprep.subr.mxu0 0.0
    %305 = vmatpush2.msra.mxu0 %v59
    %306 = vmatprep.subr.mxu0 0.0
    %307 = vmatpush2.msra.mxu0 %v58
    %308 = vmatprep.subr.mxu0 0.0
    %309 = vmatpush2.msra.mxu0 %v57
    %310 = vmatprep.subr.mxu0 0.0
    %311 = vmatpush2.msra.mxu0 %v56
    %312 = vmatprep.subr.mxu0 0.0
    %313 = vmatpush2.msra.mxu0 %v55
    %314 = vmatprep.subr.mxu0 0.0
    %315 = vmatpush2.msra.mxu0 %v54
    %316 = vmatprep.subr.mxu0 0.0
    %317 = vmatpush2.msra.mxu0 %v53
    %318 = vmatprep.subr.mxu0 0.0
    %319 = vmatpush2.msra.mxu0 %v52
    %320 = vmatprep.subr.mxu0 0.0
    %321 = vmatpush2.msra.mxu0 %v51
    %322 = vmatprep.mubr.f32.mxu0 %v211
    %323 = vmatmul.mubr.f32.gmra.mxu0 %v210
    %v324 = vpop.f32.mrf.mxu0
    %v325 = vadd.f32 %v168, %v324
    %v326 = vpop.f32.mrf.mxu0
    %327 = vdwg.mxu0
    %328 = vmatprep.subr.mxu0 0.0
    %329 = vmatpush1.msra.mxu0 %v82
    %330 = vmatprep.subr.mxu0 0.0
    %331 = vmatpush1.msra.mxu0 %v81
    %332 = vmatprep.subr.mxu0 0.0
    %333 = vmatpush1.msra.mxu0 %v80
    %334 = vmatprep.subr.mxu0 0.0
    %335 = vmatpush1.msra.mxu0 %v79
    %336 = vmatprep.subr.mxu0 0.0
    %337 = vmatpush1.msra.mxu0 %v78
    %338 = vmatprep.subr.mxu0 0.0
    %339 = vmatpush1.msra.mxu0 %v77
    %340 = vmatprep.subr.mxu0 0.0
    %341 = vmatpush1.msra.mxu0 %v76
    %342 = vmatprep.subr.mxu0 0.0
    %343 = vmatpush1.msra.mxu0 %v75
    %344 = vmatprep.subr.mxu0 0.0
    %345 = vmatpush1.msra.mxu0 %v74
    %346 = vmatprep.subr.mxu0 0.0
    %347 = vmatpush1.msra.mxu0 %v73
    %348 = vmatprep.subr.mxu0 0.0
    %349 = vmatpush1.msra.mxu0 %v72
    %350 = vmatprep.subr.mxu0 0.0
    %351 = vmatpush1.msra.mxu0 %v71
    %352 = vmatprep.subr.mxu0 0.0
    %353 = vmatpush1.msra.mxu0 %v70
    %354 = vmatprep.subr.mxu0 0.0
    %355 = vmatpush1.msra.mxu0 %v69
    %356 = vmatprep.subr.mxu0 0.0
    %357 = vmatpush1.msra.mxu0 %v68
    %358 = vmatprep.subr.mxu0 0.0
    %359 = vmatpush1.msra.mxu0 %v67
    %360 = vmatprep.subr.mxu0 0.0
    %361 = vmatpush2.msra.mxu0 %v98
    %362 = vmatprep.subr.mxu0 0.0
    %363 = vmatpush2.msra.mxu0 %v97
    %364 = vmatprep.subr.mxu0 0.0
    %365 = vmatpush2.msra.mxu0 %v96
    %366 = vmatprep.subr.mxu0 0.0
    %367 = vmatpush2.msra.mxu0 %v95
    %368 = vmatprep.subr.mxu0 0.0
    %369 = vmatpush2.msra.mxu0 %v94
    %370 = vmatprep.subr.mxu0 0.0
    %371 = vmatpush2.msra.mxu0 %v93
    %372 = vmatprep.subr.mxu0 0.0
    %373 = vmatpush2.msra.mxu0 %v92
    %374 = vmatprep.subr.mxu0 0.0
    %375 = vmatpush2.msra.mxu0 %v91
    %376 = vmatprep.subr.mxu0 0.0
    %377 = vmatpush2.msra.mxu0 %v90
    %378 = vmatprep.subr.mxu0 0.0
    %379 = vmatpush2.msra.mxu0 %v89
    %380 = vmatprep.subr.mxu0 0.0
    %381 = vmatpush2.msra.mxu0 %v88
    %382 = vmatprep.subr.mxu0 0.0
    %383 = vmatpush2.msra.mxu0 %v87
    %384 = vmatprep.subr.mxu0 0.0
    %385 = vmatpush2.msra.mxu0 %v86
    %386 = vmatprep.subr.mxu0 0.0
    %387 = vmatpush2.msra.mxu0 %v85
    %388 = vmatprep.subr.mxu0 0.0
    %389 = vmatpush2.msra.mxu0 %v84
    %390 = vmatprep.subr.mxu0 0.0
    %391 = vmatpush2.msra.mxu0 %v83
    %392 = vmatprep.mubr.f32.mxu0 %v213
    %393 = vmatmul.mubr.f32.gmra.mxu0 %v212
    %v394 = vpop.f32.mrf.mxu0
    %v395 = vadd.f32 %v325, %v394
    %v396 = vpop.f32.mrf.mxu0
    %397 = vdwg.mxu0
    %398 = vmatprep.subr.mxu0 0.0
    %399 = vmatpush1.msra.mxu0 %v114
    %400 = vmatprep.subr.mxu0 0.0
    %401 = vmatpush1.msra.mxu0 %v113
    %402 = vmatprep.subr.mxu0 0.0
    %403 = vmatpush1.msra.mxu0 %v112
    %404 = vmatprep.subr.mxu0 0.0
    %405 = vmatpush1.msra.mxu0 %v111
    %406 = vmatprep.subr.mxu0 0.0
    %407 = vmatpush1.msra.mxu0 %v110
    %408 = vmatprep.subr.mxu0 0.0
    %409 = vmatpush1.msra.mxu0 %v109
    %410 = vmatprep.subr.mxu0 0.0
    %411 = vmatpush1.msra.mxu0 %v108
    %412 = vmatprep.subr.mxu0 0.0
    %413 = vmatpush1.msra.mxu0 %v107
    %414 = vmatprep.subr.mxu0 0.0
    %415 = vmatpush1.msra.mxu0 %v106
    %416 = vmatprep.subr.mxu0 0.0
    %417 = vmatpush1.msra.mxu0 %v105
    %418 = vmatprep.subr.mxu0 0.0
    %419 = vmatpush1.msra.mxu0 %v104
    %420 = vmatprep.subr.mxu0 0.0
    %421 = vmatpush1.msra.mxu0 %v103
    %422 = vmatprep.subr.mxu0 0.0
    %423 = vmatpush1.msra.mxu0 %v102
    %424 = vmatprep.subr.mxu0 0.0
    %425 = vmatpush1.msra.mxu0 %v101
    %426 = vmatprep.subr.mxu0 0.0
    %427 = vmatpush1.msra.mxu0 %v100
    %428 = vmatprep.subr.mxu0 0.0
    %429 = vmatpush1.msra.mxu0 %v99
    %430 = vmatprep.subr.mxu0 0.0
    %431 = vmatpush2.msra.mxu0 %v130
    %432 = vmatprep.subr.mxu0 0.0
    %433 = vmatpush2.msra.mxu0 %v129
    %434 = vmatprep.subr.mxu0 0.0
    %435 = vmatpush2.msra.mxu0 %v128
    %436 = vmatprep.subr.mxu0 0.0
    %437 = vmatpush2.msra.mxu0 %v127
    %438 = vmatprep.subr.mxu0 0.0
    %439 = vmatpush2.msra.mxu0 %v126
    %440 = vmatprep.subr.mxu0 0.0
    %441 = vmatpush2.msra.mxu0 %v125
    %442 = vmatprep.subr.mxu0 0.0
    %443 = vmatpush2.msra.mxu0 %v124
    %444 = vmatprep.subr.mxu0 0.0
    %445 = vmatpush2.msra.mxu0 %v123
    %446 = vmatprep.subr.mxu0 0.0
    %447 = vmatpush2.msra.mxu0 %v122
    %448 = vmatprep.subr.mxu0 0.0
    %449 = vmatpush2.msra.mxu0 %v121
    %450 = vmatprep.subr.mxu0 0.0
    %451 = vmatpush2.msra.mxu0 %v120
    %452 = vmatprep.subr.mxu0 0.0
    %453 = vmatpush2.msra.mxu0 %v119
    %454 = vmatprep.subr.mxu0 0.0
    %455 = vmatpush2.msra.mxu0 %v118
    %456 = vmatprep.subr.mxu0 0.0
    %457 = vmatpush2.msra.mxu0 %v117
    %458 = vmatprep.subr.mxu0 0.0
    %459 = vmatpush2.msra.mxu0 %v116
    %460 = vmatprep.subr.mxu0 0.0
    %461 = vmatpush2.msra.mxu0 %v115
    %462 = vmatprep.mubr.f32.mxu0 %v247
    %463 = vmatmul.mubr.f32.gmra.mxu0 %v246
    %v464 = vpop.f32.mrf.mxu0
    %v465 = vadd.f32 %v395, %v464
    %v466 = vpop.f32.mrf.mxu0
    %467 = vdwg.mxu0
    %468 = vmatprep.subr.mxu0 0.0
    %469 = vmatpush1.msra.mxu0 %v146
    %470 = vmatprep.subr.mxu0 0.0
    %471 = vmatpush1.msra.mxu0 %v145
    %472 = vmatprep.subr.mxu0 0.0
    %473 = vmatpush1.msra.mxu0 %v144
    %474 = vmatprep.subr.mxu0 0.0
    %475 = vmatpush1.msra.mxu0 %v143
    %476 = vmatprep.subr.mxu0 0.0
    %477 = vmatpush1.msra.mxu0 %v142
    %478 = vmatprep.subr.mxu0 0.0
    %479 = vmatpush1.msra.mxu0 %v141
    %480 = vmatprep.subr.mxu0 0.0
    %481 = vmatpush1.msra.mxu0 %v140
    %482 = vmatprep.subr.mxu0 0.0
    %483 = vmatpush1.msra.mxu0 %v139
    %484 = vmatprep.subr.mxu0 0.0
    %485 = vmatpush1.msra.mxu0 %v138
    %486 = vmatprep.subr.mxu0 0.0
    %487 = vmatpush1.msra.mxu0 %v137
    %488 = vmatprep.subr.mxu0 0.0
    %489 = vmatpush1.msra.mxu0 %v136
    %490 = vmatprep.subr.mxu0 0.0
    %491 = vmatpush1.msra.mxu0 %v135
    %492 = vmatprep.subr.mxu0 0.0
    %493 = vmatpush1.msra.mxu0 %v134
    %494 = vmatprep.subr.mxu0 0.0
    %495 = vmatpush1.msra.mxu0 %v133
    %496 = vmatprep.subr.mxu0 0.0
    %497 = vmatpush1.msra.mxu0 %v132
    %498 = vmatprep.subr.mxu0 0.0
    %499 = vmatpush1.msra.mxu0 %v131
    %500 = vmatprep.subr.mxu0 0.0
    %501 = vmatpush2.msra.mxu0 %v162
    %502 = vmatprep.subr.mxu0 0.0
    %503 = vmatpush2.msra.mxu0 %v161
    %504 = vmatprep.subr.mxu0 0.0
    %505 = vmatpush2.msra.mxu0 %v160
    %506 = vmatprep.subr.mxu0 0.0
    %507 = vmatpush2.msra.mxu0 %v159
    %508 = vmatprep.subr.mxu0 0.0
    %509 = vmatpush2.msra.mxu0 %v158
    %510 = vmatprep.subr.mxu0 0.0
    %511 = vmatpush2.msra.mxu0 %v157
    %512 = vmatprep.subr.mxu0 0.0
    %513 = vmatpush2.msra.mxu0 %v156
    %514 = vmatprep.subr.mxu0 0.0
    %515 = vmatpush2.msra.mxu0 %v155
    %516 = vmatprep.subr.mxu0 0.0
    %517 = vmatpush2.msra.mxu0 %v154
    %518 = vmatprep.subr.mxu0 0.0
    %519 = vmatpush2.msra.mxu0 %v153
    %520 = vmatprep.subr.mxu0 0.0
    %521 = vmatpush2.msra.mxu0 %v152
    %522 = vmatprep.subr.mxu0 0.0
    %523 = vmatpush2.msra.mxu0 %v151
    %524 = vmatprep.subr.mxu0 0.0
    %525 = vmatpush2.msra.mxu0 %v150
    %526 = vmatprep.subr.mxu0 0.0
    %527 = vmatpush2.msra.mxu0 %v149
    %528 = vmatprep.subr.mxu0 0.0
    %529 = vmatpush2.msra.mxu0 %v148
    %530 = vmatprep.subr.mxu0 0.0
    %531 = vmatpush2.msra.mxu0 %v147
    %532 = vmatprep.mubr.f32.mxu0 %v249
    %533 = vmatmul.mubr.f32.gmra.mxu0 %v248
    %v534 = vpop.f32.mrf.mxu0
    %v535 = vadd.f32 %v465, %v534
    %v536 = vpop.f32.mrf.mxu0
    %537 = vdwg.mxu0
    %v538 = vmax.f32 %v535, 0.0
    %v539 = vld [vmem:[%s3] sm:$0xff]
    %v540 = vld [vmem:[%s3 + $0x8] sm:$0xff]
    %v541 = vld [vmem:[%s3 + $0x10] sm:$0xff]
    %v542 = vld [vmem:[%s3 + $0x18] sm:$0xff]
    %v543 = vld [vmem:[%s4] sm:$0x1]
    %v545 = vlaneseq
    %v546 = vshrl.u32 %v545, 7
    %v547 = vsub.s32 0, %v546
    %v548 = vrot.slane %v543, %v547
    %vm550 = vcmask 261120
    %v552 = vsel %vm550, %v538, 0
    %554 = vmatprep.subr.mxu0 0.0
    %555 = vmatpush1.msra.mxu0 0.0
    %556 = vmatprep.subr.mxu0 0.0
    %557 = vmatpush1.msra.mxu0 0.0
    %558 = vmatprep.subr.mxu0 0.0
    %559 = vmatpush1.msra.mxu0 0.0
    %560 = vmatprep.subr.mxu0 0.0
    %561 = vmatpush1.msra.mxu0 0.0
    %562 = vmatprep.subr.mxu0 0.0
    %563 = vmatpush1.msra.mxu0 0.0
    %564 = vmatprep.subr.mxu0 0.0
    %565 = vmatpush1.msra.mxu0 0.0
    %566 = vmatprep.subr.mxu0 0.0
    %567 = vmatpush1.msra.mxu0 0.0
    %568 = vmatprep.subr.mxu0 0.0
    %569 = vmatpush1.msra.mxu0 0.0
    %570 = vmatprep.subr.mxu0 0.0
    %571 = vmatpush1.msra.mxu0 0.0
    %572 = vmatprep.subr.mxu0 0.0
    %573 = vmatpush1.msra.mxu0 0.0
    %574 = vmatprep.subr.mxu0 0.0
    %575 = vmatpush1.msra.mxu0 0.0
    %576 = vmatprep.subr.mxu0 0.0
    %577 = vmatpush1.msra.mxu0 0.0
    %578 = vmatprep.subr.mxu0 0.0
    %579 = vmatpush1.msra.mxu0 %v542
    %580 = vmatprep.subr.mxu0 0.0
    %581 = vmatpush1.msra.mxu0 %v541
    %582 = vmatprep.subr.mxu0 0.0
    %583 = vmatpush1.msra.mxu0 %v540
    %584 = vmatprep.subr.mxu0 0.0
    %585 = vmatpush1.msra.mxu0 %v539
    %586 = vmatprep.subr.mxu0 0.0
    %587 = vmatpush2.msra.mxu0 0.0
    %588 = vmatprep.subr.mxu0 0.0
    %589 = vmatpush2.msra.mxu0 0.0
    %590 = vmatprep.subr.mxu0 0.0
    %591 = vmatpush2.msra.mxu0 0.0
    %592 = vmatprep.subr.mxu0 0.0
    %593 = vmatpush2.msra.mxu0 0.0
    %594 = vmatprep.subr.mxu0 0.0
    %595 = vmatpush2.msra.mxu0 0.0
    %596 = vmatprep.subr.mxu0 0.0
    %597 = vmatpush2.msra.mxu0 0.0
    %598 = vmatprep.subr.mxu0 0.0
    %599 = vmatpush2.msra.mxu0 0.0
    %600 = vmatprep.subr.mxu0 0.0
    %601 = vmatpush2.msra.mxu0 0.0
    %602 = vmatprep.subr.mxu0 0.0
    %603 = vmatpush2.msra.mxu0 0.0
    %604 = vmatprep.subr.mxu0 0.0
    %605 = vmatpush2.msra.mxu0 0.0
    %606 = vmatprep.subr.mxu0 0.0
    %607 = vmatpush2.msra.mxu0 0.0
    %608 = vmatprep.subr.mxu0 0.0
    %609 = vmatpush2.msra.mxu0 0.0
    %610 = vmatprep.subr.mxu0 0.0
    %611 = vmatpush2.msra.mxu0 0.0
    %612 = vmatprep.subr.mxu0 0.0
    %613 = vmatpush2.msra.mxu0 0.0
    %614 = vmatprep.subr.mxu0 0.0
    %615 = vmatpush2.msra.mxu0 0.0
    %616 = vmatprep.subr.mxu0 0.0
    %617 = vmatpush2.msra.mxu0 0.0
    %618 = vmatprep.mubr.f32.mxu0 0.0
    %619 = vmatmul.mubr.f32.gmra.mxu0 %v552
    %v620 = vpop.f32.mrf.mxu0
    %v621 = vadd.f32 %v548, %v620
    %v622 = vpop.f32.mrf.mxu0
    %623 = vdwg.mxu0
    %v624 = vadd.f32 %v621, %v538
    %v625 = vmax.f32 %v624, 0.0
    %s626 = scalar_lea.vmem %s3, 32
    %v627 = vld [vmem:[%s626] sm:$0xff]
    %v628 = vld [vmem:[%s626 + $0x8] sm:$0xff]
    %v629 = vld [vmem:[%s626 + $0x10] sm:$0xff]
    %v630 = vld [vmem:[%s626 + $0x18] sm:$0xff]
    %s631 = scalar_lea.vmem %s4, 1
    %v632 = vld [vmem:[%s631] sm:$0x1]
    %v634 = vlaneseq
    %v635 = vshrl.u32 %v634, 7
    %v636 = vsub.s32 0, %v635
    %v637 = vrot.slane %v632, %v636
    %v640 = vsel %vm550, %v625, 0
    %642 = vmatprep.subr.mxu0 0.0
    %643 = vmatpush1.msra.mxu0 0.0
    %644 = vmatprep.subr.mxu0 0.0
    %645 = vmatpush1.msra.mxu0 0.0
    %646 = vmatprep.subr.mxu0 0.0
    %647 = vmatpush1.msra.mxu0 0.0
    %648 = vmatprep.subr.mxu0 0.0
    %649 = vmatpush1.msra.mxu0 0.0
    %650 = vmatprep.subr.mxu0 0.0
    %651 = vmatpush1.msra.mxu0 0.0
    %652 = vmatprep.subr.mxu0 0.0
    %653 = vmatpush1.msra.mxu0 0.0
    %654 = vmatprep.subr.mxu0 0.0
    %655 = vmatpush1.msra.mxu0 0.0
    %656 = vmatprep.subr.mxu0 0.0
    %657 = vmatpush1.msra.mxu0 0.0
    %658 = vmatprep.subr.mxu0 0.0
    %659 = vmatpush1.msra.mxu0 0.0
    %660 = vmatprep.subr.mxu0 0.0
    %661 = vmatpush1.msra.mxu0 0.0
    %662 = vmatprep.subr.mxu0 0.0
    %663 = vmatpush1.msra.mxu0 0.0
    %664 = vmatprep.subr.mxu0 0.0
    %665 = vmatpush1.msra.mxu0 0.0
    %666 = vmatprep.subr.mxu0 0.0
    %667 = vmatpush1.msra.mxu0 %v630
    %668 = vmatprep.subr.mxu0 0.0
    %669 = vmatpush1.msra.mxu0 %v629
    %670 = vmatprep.subr.mxu0 0.0
    %671 = vmatpush1.msra.mxu0 %v628
    %672 = vmatprep.subr.mxu0 0.0
    %673 = vmatpush1.msra.mxu0 %v627
    %674 = vmatprep.subr.mxu0 0.0
    %675 = vmatpush2.msra.mxu0 0.0
    %676 = vmatprep.subr.mxu0 0.0
    %677 = vmatpush2.msra.mxu0 0.0
    %678 = vmatprep.subr.mxu0 0.0
    %679 = vmatpush2.msra.mxu0 0.0
    %680 = vmatprep.subr.mxu0 0.0
    %681 = vmatpush2.msra.mxu0 0.0
    %682 = vmatprep.subr.mxu0 0.0
    %683 = vmatpush2.msra.mxu0 0.0
    %684 = vmatprep.subr.mxu0 0.0
    %685 = vmatpush2.msra.mxu0 0.0
    %686 = vmatprep.subr.mxu0 0.0
    %687 = vmatpush2.msra.mxu0 0.0
    %688 = vmatprep.subr.mxu0 0.0
    %689 = vmatpush2.msra.mxu0 0.0
    %690 = vmatprep.subr.mxu0 0.0
    %691 = vmatpush2.msra.mxu0 0.0
    %692 = vmatprep.subr.mxu0 0.0
    %693 = vmatpush2.msra.mxu0 0.0
    %694 = vmatprep.subr.mxu0 0.0
    %695 = vmatpush2.msra.mxu0 0.0
    %696 = vmatprep.subr.mxu0 0.0
    %697 = vmatpush2.msra.mxu0 0.0
    %698 = vmatprep.subr.mxu0 0.0
    %699 = vmatpush2.msra.mxu0 0.0
    %700 = vmatprep.subr.mxu0 0.0
    %701 = vmatpush2.msra.mxu0 0.0
    %702 = vmatprep.subr.mxu0 0.0
    %703 = vmatpush2.msra.mxu0 0.0
    %704 = vmatprep.subr.mxu0 0.0
    %705 = vmatpush2.msra.mxu0 0.0
    %706 = vmatprep.mubr.f32.mxu0 0.0
    %707 = vmatmul.mubr.f32.gmra.mxu0 %v640
    %v708 = vpop.f32.mrf.mxu0
    %v709 = vadd.f32 %v637, %v708
    %v710 = vpop.f32.mrf.mxu0
    %711 = vdwg.mxu0
    %v712 = vadd.f32 %v709, %v625
    %v713 = vmax.f32 %v712, 0.0
    %s714 = scalar_lea.vmem %s3, 64
    %v715 = vld [vmem:[%s714] sm:$0xff]
    %v716 = vld [vmem:[%s714 + $0x8] sm:$0xff]
    %v717 = vld [vmem:[%s714 + $0x10] sm:$0xff]
    %v718 = vld [vmem:[%s714 + $0x18] sm:$0xff]
    %s719 = scalar_lea.vmem %s4, 2
    %v720 = vld [vmem:[%s719] sm:$0x1]
    %v722 = vlaneseq
    %v723 = vshrl.u32 %v722, 7
    %v724 = vsub.s32 0, %v723
    %v725 = vrot.slane %v720, %v724
    %v728 = vsel %vm550, %v713, 0
    %730 = vmatprep.subr.mxu0 0.0
    %731 = vmatpush1.msra.mxu0 0.0
    %732 = vmatprep.subr.mxu0 0.0
    %733 = vmatpush1.msra.mxu0 0.0
    %734 = vmatprep.subr.mxu0 0.0
    %735 = vmatpush1.msra.mxu0 0.0
    %736 = vmatprep.subr.mxu0 0.0
    %737 = vmatpush1.msra.mxu0 0.0
    %738 = vmatprep.subr.mxu0 0.0
    %739 = vmatpush1.msra.mxu0 0.0
    %740 = vmatprep.subr.mxu0 0.0
    %741 = vmatpush1.msra.mxu0 0.0
    %742 = vmatprep.subr.mxu0 0.0
    %743 = vmatpush1.msra.mxu0 0.0
    %744 = vmatprep.subr.mxu0 0.0
    %745 = vmatpush1.msra.mxu0 0.0
    %746 = vmatprep.subr.mxu0 0.0
    %747 = vmatpush1.msra.mxu0 0.0
    %748 = vmatprep.subr.mxu0 0.0
    %749 = vmatpush1.msra.mxu0 0.0
    %750 = vmatprep.subr.mxu0 0.0
    %751 = vmatpush1.msra.mxu0 0.0
    %752 = vmatprep.subr.mxu0 0.0
    %753 = vmatpush1.msra.mxu0 0.0
    %754 = vmatprep.subr.mxu0 0.0
    %755 = vmatpush1.msra.mxu0 %v718
    %756 = vmatprep.subr.mxu0 0.0
    %757 = vmatpush1.msra.mxu0 %v717
    %758 = vmatprep.subr.mxu0 0.0
    %759 = vmatpush1.msra.mxu0 %v716
    %760 = vmatprep.subr.mxu0 0.0
    %761 = vmatpush1.msra.mxu0 %v715
    %762 = vmatprep.subr.mxu0 0.0
    %763 = vmatpush2.msra.mxu0 0.0
    %764 = vmatprep.subr.mxu0 0.0
    %765 = vmatpush2.msra.mxu0 0.0
    %766 = vmatprep.subr.mxu0 0.0
    %767 = vmatpush2.msra.mxu0 0.0
    %768 = vmatprep.subr.mxu0 0.0
    %769 = vmatpush2.msra.mxu0 0.0
    %770 = vmatprep.subr.mxu0 0.0
    %771 = vmatpush2.msra.mxu0 0.0
    %772 = vmatprep.subr.mxu0 0.0
    %773 = vmatpush2.msra.mxu0 0.0
    %774 = vmatprep.subr.mxu0 0.0
    %775 = vmatpush2.msra.mxu0 0.0
    %776 = vmatprep.subr.mxu0 0.0
    %777 = vmatpush2.msra.mxu0 0.0
    %778 = vmatprep.subr.mxu0 0.0
    %779 = vmatpush2.msra.mxu0 0.0
    %780 = vmatprep.subr.mxu0 0.0
    %781 = vmatpush2.msra.mxu0 0.0
    %782 = vmatprep.subr.mxu0 0.0
    %783 = vmatpush2.msra.mxu0 0.0
    %784 = vmatprep.subr.mxu0 0.0
    %785 = vmatpush2.msra.mxu0 0.0
    %786 = vmatprep.subr.mxu0 0.0
    %787 = vmatpush2.msra.mxu0 0.0
    %788 = vmatprep.subr.mxu0 0.0
    %789 = vmatpush2.msra.mxu0 0.0
    %790 = vmatprep.subr.mxu0 0.0
    %791 = vmatpush2.msra.mxu0 0.0
    %792 = vmatprep.subr.mxu0 0.0
    %793 = vmatpush2.msra.mxu0 0.0
    %794 = vmatprep.mubr.f32.mxu0 0.0
    %795 = vmatmul.mubr.f32.gmra.mxu0 %v728
    %v796 = vpop.f32.mrf.mxu0
    %v797 = vadd.f32 %v725, %v796
    %v798 = vpop.f32.mrf.mxu0
    %799 = vdwg.mxu0
    %v800 = vadd.f32 %v797, %v713
    %v801 = vmax.f32 %v800, 0.0
    %v802 = vld [vmem:[%s5] sm:$0xff]
    %v803 = vld [vmem:[%s5 + $0x8] sm:$0xff]
    %v804 = vld [vmem:[%s5 + $0x10] sm:$0xff]
    %v805 = vld [vmem:[%s5 + $0x18] sm:$0xff]
    %v806 = vld [vmem:[%s6] sm:$0x1]
    %v808 = vlaneseq
    %v809 = vshrl.u32 %v808, 7
    %v810 = vsub.s32 0, %v809
    %v811 = vrot.slane %v806, %v810
    %v814 = vsel %vm550, %v801, 0
    %816 = vmatprep.subr.mxu0 0.0
    %817 = vmatpush1.msra.mxu0 0.0
    %818 = vmatprep.subr.mxu0 0.0
    %819 = vmatpush1.msra.mxu0 0.0
    %820 = vmatprep.subr.mxu0 0.0
    %821 = vmatpush1.msra.mxu0 0.0
    %822 = vmatprep.subr.mxu0 0.0
    %823 = vmatpush1.msra.mxu0 0.0
    %824 = vmatprep.subr.mxu0 0.0
    %825 = vmatpush1.msra.mxu0 0.0
    %826 = vmatprep.subr.mxu0 0.0
    %827 = vmatpush1.msra.mxu0 0.0
    %828 = vmatprep.subr.mxu0 0.0
    %829 = vmatpush1.msra.mxu0 0.0
    %830 = vmatprep.subr.mxu0 0.0
    %831 = vmatpush1.msra.mxu0 0.0
    %832 = vmatprep.subr.mxu0 0.0
    %833 = vmatpush1.msra.mxu0 0.0
    %834 = vmatprep.subr.mxu0 0.0
    %835 = vmatpush1.msra.mxu0 0.0
    %836 = vmatprep.subr.mxu0 0.0
    %837 = vmatpush1.msra.mxu0 0.0
    %838 = vmatprep.subr.mxu0 0.0
    %839 = vmatpush1.msra.mxu0 0.0
    %840 = vmatprep.subr.mxu0 0.0
    %841 = vmatpush1.msra.mxu0 %v805
    %842 = vmatprep.subr.mxu0 0.0
    %843 = vmatpush1.msra.mxu0 %v804
    %844 = vmatprep.subr.mxu0 0.0
    %845 = vmatpush1.msra.mxu0 %v803
    %846 = vmatprep.subr.mxu0 0.0
    %847 = vmatpush1.msra.mxu0 %v802
    %848 = vmatprep.subr.mxu0 0.0
    %849 = vmatpush2.msra.mxu0 0.0
    %850 = vmatprep.subr.mxu0 0.0
    %851 = vmatpush2.msra.mxu0 0.0
    %852 = vmatprep.subr.mxu0 0.0
    %853 = vmatpush2.msra.mxu0 0.0
    %854 = vmatprep.subr.mxu0 0.0
    %855 = vmatpush2.msra.mxu0 0.0
    %856 = vmatprep.subr.mxu0 0.0
    %857 = vmatpush2.msra.mxu0 0.0
    %858 = vmatprep.subr.mxu0 0.0
    %859 = vmatpush2.msra.mxu0 0.0
    %860 = vmatprep.subr.mxu0 0.0
    %861 = vmatpush2.msra.mxu0 0.0
    %862 = vmatprep.subr.mxu0 0.0
    %863 = vmatpush2.msra.mxu0 0.0
    %864 = vmatprep.subr.mxu0 0.0
    %865 = vmatpush2.msra.mxu0 0.0
    %866 = vmatprep.subr.mxu0 0.0
    %867 = vmatpush2.msra.mxu0 0.0
    %868 = vmatprep.subr.mxu0 0.0
    %869 = vmatpush2.msra.mxu0 0.0
    %870 = vmatprep.subr.mxu0 0.0
    %871 = vmatpush2.msra.mxu0 0.0
    %872 = vmatprep.subr.mxu0 0.0
    %873 = vmatpush2.msra.mxu0 0.0
    %874 = vmatprep.subr.mxu0 0.0
    %875 = vmatpush2.msra.mxu0 0.0
    %876 = vmatprep.subr.mxu0 0.0
    %877 = vmatpush2.msra.mxu0 0.0
    %878 = vmatprep.subr.mxu0 0.0
    %879 = vmatpush2.msra.mxu0 0.0
    %880 = vmatprep.mubr.f32.mxu0 0.0
    %881 = vmatmul.mubr.f32.gmra.mxu0 %v814
    %v882 = vpop.f32.mrf.mxu0
    %v883 = vadd.f32 %v811, %v882
    %v884 = vpop.f32.mrf.mxu0
    %885 = vdwg.mxu0
    %886 = vst [vmem:[#allocation2] sm:$0xff] %v883
    // Predicated region
    $region30: #{tpu_custom_call.1} parent=1 // pred_check
      _
    $region31: #{tpu_custom_call.1} parent=1 // pred_check_branch
      %888 = sbr.rel (0) target = $region33
    $region32: #{tpu_custom_call.1} parent=1 // pred_region
      %s890 = ssub.s32 128, 32
      %891 = vsyncadd [#allocation3], %s890
      %s892 = sshll.u32 [#allocation2], 4
      %s893 = int_to_ptr.vmem [resolvable:$true] %s892
      %898 = dma.vmem_to_hbm [thread:$0]  %s893, 32, %s7, [#allocation3], 32, 32, 2
    $region33: #{tpu_custom_call.1} parent=1 // pred_fallthru
      _
    // Predicated region
    $region34: #{tpu_custom_call.1} parent=1 // pred_check
      _
    $region35: #{tpu_custom_call.1} parent=1 // pred_check_branch
      %900 = sbr.rel (0) target = $region37
    $region36: #{tpu_custom_call.1} parent=1 // pred_region
      %901 = dma.done [#allocation3], 128
    $region37: #{tpu_custom_call.1} parent=1 // pred_fallthru
      _
    %902 = vsyncpa [#allocation3], 1

</llo_original>
